<compile_context>
chip_gen: v7x
topology: tpu7x:2x2x1
jax: 0.10.0
libtpu: 0.0.40
codegen_flags: <defaults>
</compile_context>

<pallas_src>
import functools

import jax
import jax.numpy as jnp
import numpy as np
from jax import lax
from jax.experimental import pallas as pl
from jax.experimental.pallas import tpu as pltpu

_C1 = 512                 # hidden conv channels (fixed by the module)
_IM2COL_CIN_MAX = 32      # at/below this Cin: full 9-tap im2col (single matmul)


def _round_up(x, m):
    return (x + m - 1) // m * m


def _single_buffered(shape, index_map):
    """BlockSpec for constant / resident blocks: request single buffering."""
    try:
        return pl.BlockSpec(shape, index_map,
                            pipeline_mode=pl.Buffered(buffer_count=1))
    except Exception:   # older jax without pipeline_mode -> default buffering
        return pl.BlockSpec(shape, index_map)


def _vmem_budget():
    """Returns (per-core VMEM capacity, vmem_limit cap, target rows per tile)."""
    try:
        cap = int(getattr(pltpu.get_tpu_info(), "vmem_capacity_bytes", 0) or 0)
    except Exception:
        cap = 0
    if cap <= 0:
        cap = 128 * 2**20
    if cap <= 64 * 2**20:                 # v7x-class core: 64 MiB, 2 TCs/chip
        return cap, 48 * 2**20, 1024
    return cap, 100 * 2**20, 2048         # v5e / v6e: 128 MiB


def _rpn_kernel_im2col(x_ref, w1_ref, b1_ref, wh_ref, bh_ref, out_ref, *, m, k):
    """Tiny-Cin path.  One (batch, row-tile) grid step.

    x_ref  : (1, row_tile, Wp, 9*Cin)  bf16  im2col'd row tile
    w1_ref : (9*Cin, 512)              bf16
    b1_ref : (1, 512)                  f32
    wh_ref : (512, Nh_pad)             bf16  fused [objectness | transformer] head
    bh_ref : (1, Nh_pad)               f32
    out_ref: (1, row_tile*Wp, Nh_pad)  f32
    """
    x2d = x_ref[0].reshape(m, k)
    hidden = jnp.maximum(
        jnp.dot(x2d, w1_ref[...], preferred_element_type=jnp.float32) + b1_ref[...],
        0.0)
    head = jnp.dot(hidden.astype(jnp.bfloat16), wh_ref[...],
                   preferred_element_type=jnp.float32) + bh_ref[...]
    out_ref[0] = head.astype(out_ref.dtype)


def _rpn_kernel_dxfold(x_ref, w1_ref, b1_ref, wh_ref, bh_ref, out_ref, *,
                       row_tile, w_pad, k):
    """Larger-Cin path.  One (batch, row-tile) grid step.

    x_ref  : (1, Hp+2, Wp, 3*Cin)      bf16  dx-folded padded image (per-batch resident)
    w1_ref : (3, 3*Cin, 512)           bf16  one tap per dy
    b1_ref : (1, 512)                  f32
    wh_ref : (512, Nh_pad)             bf16
    bh_ref : (1, Nh_pad)               f32
    out_ref: (1, row_tile*Wp, Nh_pad)  f32
    """
    t = pl.program_id(1)
    row0 = t * row_tile
    m = row_tile * w_pad

    acc = None
    for dy in range(3):               # slices along H only -> no W-offset relayouts
        tap = x_ref[0, pl.ds(row0 + dy, row_tile), :, :].reshape(m, k)
        d = jnp.dot(tap, w1_ref[dy], preferred_element_type=jnp.float32)
        acc = d if acc is None else acc + d

    hidden = jnp.maximum(acc + b1_ref[...], 0.0)
    head = jnp.dot(hidden.astype(jnp.bfloat16), wh_ref[...],
                   preferred_element_type=jnp.float32) + bh_ref[...]
    out_ref[0] = head.astype(out_ref.dtype)


def rpn_forward_pallas(x_nchw, params, num_anchors, *, row_tile=None):
    """Eval-mode RPN forward.  x_nchw: (B, Cin, H, W) float32.

    Returns (anchor_objectnesses, anchor_transformers) with shapes
    (B, H*W*A, 2) and (B, H*W*A, 4), identical to the PyTorch module.
    """
    w1, b1, wo, bo, wt, bt = params            # torch-shaped weights
    B, Cin, H, W = x_nchw.shape
    A = num_anchors
    Nh = 6 * A                                 # fused head width (2A obj + 4A trf)
    Nh_pad = _round_up(Nh, 128)                # lane-dense output
    use_im2col = Cin <= _IM2COL_CIN_MAX
    K = (9 if use_im2col else 3) * Cin         # conv matmul contraction size

    vmem_cap, vmem_cap_budget, target_m = _vmem_budget()
    small_vmem = vmem_cap <= 64 * 2**20
    Wp = _round_up(W, 8)                       # sublane-aligned width

    def n_tiles(rt):
        return -(-H // rt)

    def est_vmem(rt):
        nt = n_tiles(rt)
        m_ = rt * Wp
        if use_im2col:
            in_bytes = 2 * m_ * K * 2                 # double-buffered bf16 row tile
            tap_tmp = 0
        else:
            in_bytes = (nt * rt + 2) * Wp * K * 2     # single-buffered resident image
            tap_tmp = 2 * m_ * K * 2                  # live bf16 tap slices
        w_bytes = 9 * Cin * _C1 * 2 + _C1 * Nh_pad * 2 + (_C1 + Nh_pad) * 4
        out_bytes = 2 * m_ * Nh_pad * 4               # double-buffered output tile
        tmp_bytes = m_ * _C1 * 4 + m_ * _C1 * 2 + m_ * Nh_pad * 4   # acc/hidden/head
        return in_bytes + w_bytes + out_bytes + tmp_bytes + tap_tmp + (4 << 20)

    if row_tile is None:
        row_tile = max(1, min(H, target_m // Wp))
        # v7x: both grid axes are "parallel"; keep B*n_t even so neither TC idles.
        if small_vmem and (B * n_tiles(row_tile)) % 2 == 1 and n_tiles(row_tile) < H:
            row_tile = -(-H // (n_tiles(row_tile) + 1))
    while row_tile > 1 and est_vmem(row_tile) > vmem_cap_budget:
        row_tile = max(1, row_tile // 2)

    n_t = n_tiles(row_tile)
    Hp = n_t * row_tile
    m = row_tile * Wp
    vmem_limit = int(min(vmem_cap_budget, max(32 * 2**20, est_vmem(row_tile))))

    # NCHW -> NHWC in bf16, zero-pad: 1 halo row/col top/left, halo + alignment
    # pad bottom/right (reproduces Conv2d padding=1; extra rows/cols give junk
    # outputs sliced off below).
    x_nhwc = jnp.transpose(x_nchw, (0, 2, 3, 1)).astype(jnp.bfloat16)
    xp = jnp.pad(x_nhwc, ((0, 0), (1, Hp - H + 1), (1, Wp - W + 1), (0, 0)))

    # torch Conv2d weights (O, I, kh, kw) -> matmul form, bf16 for the MXU.
    w1_hwio = jnp.transpose(w1, (2, 3, 1, 0))                  # (3, 3, Cin, 512)
    b1_row = b1.reshape(1, _C1).astype(jnp.float32)
    wh = jnp.concatenate([wo[:, :, 0, 0].T, wt[:, :, 0, 0].T], axis=1)   # (512, 6A)
    wh = jnp.pad(wh, ((0, 0), (0, Nh_pad - Nh))).astype(jnp.bfloat16)
    bh = jnp.concatenate([bo, bt]).reshape(1, Nh)
    bh = jnp.pad(bh, ((0, 0), (0, Nh_pad - Nh))).astype(jnp.float32)

    if use_im2col:
        # Fold all 9 taps into channels -> one K=9*Cin matmul per row tile; the
        # im2col'd image is tiled along H (no in-kernel halo slicing needed).
        ximg = jnp.concatenate(
            [xp[:, dy:dy + Hp, dx:dx + Wp, :] for dy in range(3) for dx in range(3)],
            axis=-1)                                           # (B, Hp, Wp, 9*Cin)
        w1_arg = w1_hwio.reshape(9 * Cin, _C1).astype(jnp.bfloat16)
        kernel = functools.partial(_rpn_kernel_im2col, m=m, k=K)
        img_spec = pl.BlockSpec((1, row_tile, Wp, K), lambda b, t: (b, t, 0, 0))
        w1_spec = _single_buffered((K, _C1), lambda b, t: (0, 0))
    else:
        # Fold only dx into channels -> 3 accumulating K=3*Cin matmuls with
        # H-only slices on a per-batch VMEM-resident padded image.
        ximg = jnp.concatenate([xp[:, :, dx:dx + Wp, :] for dx in range(3)],
                               axis=-1)                        # (B, Hp+2, Wp, 3*Cin)
        w1_arg = w1_hwio.reshape(3, 3 * Cin, _C1).astype(jnp.bfloat16)
        kernel = functools.partial(_rpn_kernel_dxfold,
                                   row_tile=row_tile, w_pad=Wp, k=K)
        img_spec = _single_buffered((1, Hp + 2, Wp, K), lambda b, t: (b, 0, 0, 0))
        w1_spec = _single_buffered((3, K, _C1), lambda b, t: (0, 0, 0))

    fused = pl.pallas_call(
        kernel,
        out_shape=jax.ShapeDtypeStruct((B, Hp * Wp, Nh_pad), jnp.float32),
        grid_spec=pltpu.PrefetchScalarGridSpec(
            num_scalar_prefetch=0,
            grid=(B, n_t),
            in_specs=[
                img_spec,
                w1_spec,
                _single_buffered((1, _C1), lambda b, t: (0, 0)),
                _single_buffered((_C1, Nh_pad), lambda b, t: (0, 0)),
                _single_buffered((1, Nh_pad), lambda b, t: (0, 0)),
            ],
            out_specs=pl.BlockSpec((1, m, Nh_pad), lambda b, t: (b, t, 0)),
        ),
        compiler_params=pltpu.CompilerParams(
            dimension_semantics=("parallel", "parallel"),
            vmem_limit_bytes=vmem_limit),
    )(ximg, w1_arg, b1_row, wh, bh)

    # Strip alignment padding, split fused head, match torch permute+view.
    fused = fused.reshape(B, Hp, Wp, Nh_pad)[:, :H, :W, :Nh]
    fused = fused.reshape(B, H * W, Nh)
    anchor_objectnesses = fused[:, :, :2 * A].reshape(B, H * W * A, 2)
    anchor_transformers = fused[:, :, 2 * A:].reshape(B, H * W * A, 4)
    return anchor_objectnesses, anchor_transformers


def rpn_forward_reference(x_nchw, params, num_anchors):
    """Pure-JAX reference (lax.conv) for numerical validation."""
    w1, b1, wo, bo, wt, bt = params
    B = x_nchw.shape[0]
    dn = ("NCHW", "OIHW", "NCHW")
    h = lax.conv_general_dilated(x_nchw, w1, (1, 1), ((1, 1), (1, 1)),
                                 dimension_numbers=dn,
                                 precision=lax.Precision.HIGHEST)
    h = jnp.maximum(h + b1[None, :, None, None], 0.0)
    obj = lax.conv_general_dilated(h, wo, (1, 1), ((0, 0), (0, 0)),
                                   dimension_numbers=dn,
                                   precision=lax.Precision.HIGHEST)
    obj = obj + bo[None, :, None, None]
    trf = lax.conv_general_dilated(h, wt, (1, 1), ((0, 0), (0, 0)),
                                   dimension_numbers=dn,
                                   precision=lax.Precision.HIGHEST)
    trf = trf + bt[None, :, None, None]
    obj = jnp.transpose(obj, (0, 2, 3, 1)).reshape(B, -1, 2)
    trf = jnp.transpose(trf, (0, 2, 3, 1)).reshape(B, -1, 4)
    return obj, trf


def make_params(key, num_features_out, num_anchors):
    """Deterministic synthetic parameters, torch Conv2d shapes (O, I, kh, kw)."""
    ks = jax.random.split(key, 6)
    s = 0.05
    w1 = s * jax.random.normal(ks[0], (512, num_features_out, 3, 3), jnp.float32)
    b1 = s * jax.random.normal(ks[1], (512,), jnp.float32)
    wo = s * jax.random.normal(ks[2], (num_anchors * 2, 512, 1, 1), jnp.float32)
    bo = s * jax.random.normal(ks[3], (num_anchors * 2,), jnp.float32)
    wt = s * jax.random.normal(ks[4], (num_anchors * 4, 512, 1, 1), jnp.float32)
    bt = s * jax.random.normal(ks[5], (num_anchors * 4,), jnp.float32)
    return (w1, b1, wo, bo, wt, bt)


if __name__ == "__main__":
    # Module config (small, consistent with the constructor):
    num_features_out = 4
    anchor_ratios = [(1, 1), (1, 2), (2, 1)]
    anchor_sizes = [128, 256, 512]
    num_anchors = len(anchor_ratios) * len(anchor_sizes)     # 9

    key = jax.random.PRNGKey(0)
    kx1, kx2, kx3, kp, kp3 = jax.random.split(key, 5)
    params = make_params(kp, num_features_out, num_anchors)

    # Config 1: B=2, Cin=4, 16x16 -> tiny-Cin im2col path, two row tiles / image.
    x1 = jax.random.normal(kx1, (2, num_features_out, 16, 16), jnp.float32)
    fwd1 = jax.jit(functools.partial(rpn_forward_pallas,
                                     num_anchors=num_anchors, row_tile=8))
    obj1, trf1 = fwd1(x1, params)
    jax.block_until_ready((obj1, trf1))
    assert obj1.shape == (2, 16 * 16 * num_anchors, 2), obj1.shape
    assert trf1.shape == (2, 16 * 16 * num_anchors, 4), trf1.shape
    obj1_ref, trf1_ref = rpn_forward_reference(x1, params, num_anchors)
    np.testing.assert_allclose(np.asarray(obj1), np.asarray(obj1_ref),
                               rtol=2e-2, atol=5e-3)
    np.testing.assert_allclose(np.asarray(trf1), np.asarray(trf1_ref),
                               rtol=2e-2, atol=5e-3)

    # Config 2: odd spatial size -> exercises H/W alignment padding across tiles.
    x2 = jax.random.normal(kx2, (1, num_features_out, 9, 12), jnp.float32)
    fwd2 = jax.jit(functools.partial(rpn_forward_pallas,
                                     num_anchors=num_anchors, row_tile=4))
    obj2, trf2 = fwd2(x2, params)
    jax.block_until_ready((obj2, trf2))
    assert obj2.shape == (1, 9 * 12 * num_anchors, 2), obj2.shape
    assert trf2.shape == (1, 9 * 12 * num_anchors, 4), trf2.shape
    obj2_ref, trf2_ref = rpn_forward_reference(x2, params, num_anchors)
    np.testing.assert_allclose(np.asarray(obj2), np.asarray(obj2_ref),
                               rtol=2e-2, atol=5e-3)
    np.testing.assert_allclose(np.asarray(trf2), np.asarray(trf2_ref),
                               rtol=2e-2, atol=5e-3)

    # Config 3: Cin=48 -> dx-folded resident-image path (3 accumulating matmuls,
    # halo correctness across two row tiles).  Slightly looser tolerance: bf16
    # inputs/weights over a larger contraction (K_eff = 9*48).
    cin3 = 48
    params3 = make_params(kp3, cin3, num_anchors)
    x3 = jax.random.normal(kx3, (1, cin3, 12, 12), jnp.float32)
    fwd3 = jax.jit(functools.partial(rpn_forward_pallas,
                                     num_anchors=num_anchors, row_tile=6))
    obj3, trf3 = fwd3(x3, params3)
    jax.block_until_ready((obj3, trf3))
    assert obj3.shape == (1, 12 * 12 * num_anchors, 2), obj3.shape
    assert trf3.shape == (1, 12 * 12 * num_anchors, 4), trf3.shape
    obj3_ref, trf3_ref = rpn_forward_reference(x3, params3, num_anchors)
    np.testing.assert_allclose(np.asarray(obj3), np.asarray(obj3_ref),
                               rtol=3e-2, atol=2e-2)
    np.testing.assert_allclose(np.asarray(trf3), np.asarray(trf3_ref),
                               rtol=3e-2, atol=2e-2)

    print("KERNEL_OK")
</pallas_src>

<mosaic_0001>
module attributes {stable_mosaic.version = 11 : i64} {
  func.func @_rpn_kernel_im2col(%arg0: i32, %arg1: i32, %arg2: memref<1x8x16x36xbf16, #tpu.memory_space<vmem>>, %arg3: memref<36x512xbf16, #tpu.memory_space<vmem>>, %arg4: memref<1x512xf32, #tpu.memory_space<vmem>>, %arg5: memref<512x128xbf16, #tpu.memory_space<vmem>>, %arg6: memref<1x128xf32, #tpu.memory_space<vmem>>, %arg7: memref<1x128x128xf32, #tpu.memory_space<vmem>>) attributes {dimension_semantics = [#tpu.dimension_semantics<parallel>, #tpu.dimension_semantics<parallel>], iteration_bounds = array<i64: 2, 2>, scalar_prefetch = 0 : i64, scratch_operands = 0 : i64, tpu.core_type = #tpu.core_type<tc>, window_params = [{transform_indices = @transform_0, window_bounds = array<i64: 1, 8, 16, 36>}, {pipeline_mode = #tpu.pipeline_mode<synchronous>, transform_indices = @transform_1, window_bounds = array<i64: 36, 512>}, {pipeline_mode = #tpu.pipeline_mode<synchronous>, transform_indices = @transform_2, window_bounds = array<i64: 1, 512>}, {pipeline_mode = #tpu.pipeline_mode<synchronous>, transform_indices = @transform_3, window_bounds = array<i64: 512, 128>}, {pipeline_mode = #tpu.pipeline_mode<synchronous>, transform_indices = @transform_4, window_bounds = array<i64: 1, 128>}, {transform_indices = @transform_5, window_bounds = array<i64: 1, 128, 128>}]} {
    %c0 = arith.constant 0 : index
    %c0_0 = arith.constant 0 : index
    %c0_1 = arith.constant 0 : index
    %c0_2 = arith.constant 0 : index
    %0 = vector.load %arg2[%c0, %c0_0, %c0_1, %c0_2] : memref<1x8x16x36xbf16, #tpu.memory_space<vmem>>, vector<1x8x16x36xbf16>
    %1 = vector.shape_cast %0 : vector<1x8x16x36xbf16> to vector<8x16x36xbf16>
    %2 = vector.shape_cast %1 : vector<8x16x36xbf16> to vector<128x36xbf16>
    %c0_3 = arith.constant 0 : index
    %c0_4 = arith.constant 0 : index
    %3 = vector.load %arg3[%c0_3, %c0_4] : memref<36x512xbf16, #tpu.memory_space<vmem>>, vector<36x512xbf16>
    %cst = arith.constant dense<0.000000e+00> : vector<128x512xf32>
    %4 = tpu.matmul %2, %3, %cst {dimension_numbers = #tpu.dot_dimension_numbers<[1], [0], [0], [1], [0, 0, 1, 1], [], []>} : vector<128x36xbf16>, vector<36x512xbf16>, vector<128x512xf32> -> vector<128x512xf32>
    %c0_5 = arith.constant 0 : index
    %c0_6 = arith.constant 0 : index
    %5 = vector.load %arg4[%c0_5, %c0_6] : memref<1x512xf32, #tpu.memory_space<vmem>>, vector<1x512xf32>
    %6 = vector.broadcast %5 : vector<1x512xf32> to vector<128x512xf32>
    %7 = arith.addf %4, %6 : vector<128x512xf32>
    %cst_7 = arith.constant 0.000000e+00 : f32
    %8 = vector.broadcast %cst_7 : f32 to vector<128x512xf32>
    %9 = arith.maximumf %7, %8 : vector<128x512xf32>
    %10 = arith.truncf %9 : vector<128x512xf32> to vector<128x512xbf16>
    %c0_8 = arith.constant 0 : index
    %c0_9 = arith.constant 0 : index
    %11 = vector.load %arg5[%c0_8, %c0_9] : memref<512x128xbf16, #tpu.memory_space<vmem>>, vector<512x128xbf16>
    %cst_10 = arith.constant dense<0.000000e+00> : vector<128x128xf32>
    %12 = tpu.matmul %10, %11, %cst_10 {dimension_numbers = #tpu.dot_dimension_numbers<[1], [0], [0], [1], [0, 0, 1, 1], [], []>} : vector<128x512xbf16>, vector<512x128xbf16>, vector<128x128xf32> -> vector<128x128xf32>
    %c0_11 = arith.constant 0 : index
    %c0_12 = arith.constant 0 : index
    %13 = vector.load %arg6[%c0_11, %c0_12] : memref<1x128xf32, #tpu.memory_space<vmem>>, vector<1x128xf32>
    %14 = vector.broadcast %13 : vector<1x128xf32> to vector<128x128xf32>
    %15 = arith.addf %12, %14 : vector<128x128xf32>
    %c0_13 = arith.constant 0 : index
    %c0_14 = arith.constant 0 : index
    %c0_15 = arith.constant 0 : index
    %16 = vector.load %arg7[%c0_13, %c0_14, %c0_15] : memref<1x128x128xf32, #tpu.memory_space<vmem>>, vector<1x128x128xf32>
    %17 = vector.shape_cast %16 : vector<1x128x128xf32> to vector<128x128xf32>
    %18 = vector.shape_cast %15 : vector<128x128xf32> to vector<1x128x128xf32>
    tpu.vector_store %arg7[%c0_13, %c0_14, %c0_15], %18 {strides = array<i32>} : memref<1x128x128xf32, #tpu.memory_space<vmem>>, vector<1x128x128xf32>,
    return
  }
  func.func @transform_0(%arg0: i32, %arg1: i32) -> (i32, i32, i32, i32) {
    %c0_i32 = arith.constant 0 : i32
    %c0_i32_0 = arith.constant 0 : i32
    %c0_i32_1 = arith.constant 0 : i32
    return %arg0, %arg1, %c0_i32, %c0_i32_0 : i32, i32, i32, i32
  }
  func.func @transform_1(%arg0: i32, %arg1: i32) -> (i32, i32) {
    %c0_i32 = arith.constant 0 : i32
    %c0_i32_0 = arith.constant 0 : i32
    %c0_i32_1 = arith.constant 0 : i32
    return %c0_i32, %c0_i32_0 : i32, i32
  }
  func.func @transform_2(%arg0: i32, %arg1: i32) -> (i32, i32) {
    %c0_i32 = arith.constant 0 : i32
    %c0_i32_0 = arith.constant 0 : i32
    %c0_i32_1 = arith.constant 0 : i32
    return %c0_i32, %c0_i32_0 : i32, i32
  }
  func.func @transform_3(%arg0: i32, %arg1: i32) -> (i32, i32) {
    %c0_i32 = arith.constant 0 : i32
    %c0_i32_0 = arith.constant 0 : i32
    %c0_i32_1 = arith.constant 0 : i32
    return %c0_i32, %c0_i32_0 : i32, i32
  }
  func.func @transform_4(%arg0: i32, %arg1: i32) -> (i32, i32) {
    %c0_i32 = arith.constant 0 : i32
    %c0_i32_0 = arith.constant 0 : i32
    %c0_i32_1 = arith.constant 0 : i32
    return %c0_i32, %c0_i32_0 : i32, i32
  }
  func.func @transform_5(%arg0: i32, %arg1: i32) -> (i32, i32, i32) {
    %c0_i32 = arith.constant 0 : i32
    %c0_i32_0 = arith.constant 0 : i32
    return %arg0, %arg1, %c0_i32 : i32, i32, i32
  }
}

</mosaic_0001>

<llo_original>
// kernel: rpn_forward_pallas.1
$region0: #{rpn_forward_pallas.1}
  #allocation0 [shape = 'u32[]', space=smem, size = 0x4, offset = 0x4, fixed_abs, tag = 'smem constant byte address 0x4 - core index']
  #allocation1 [shape = 'u32[144,128]{1,0:T(1,128)}', space=vmem, size = 0x12000, scoped, tag = 'internal scratch']
  %s0 = inlined_call_operand.vmem [shape: bf16[2,16,16,36], index: 0, kind: input, shape index: {}]
  %s1 = inlined_call_operand.vmem [shape: bf16[36,512], index: 1, kind: input, shape index: {}]
  %s2 = inlined_call_operand.vmem [shape: f32[1,512], index: 2, kind: input, shape index: {}]
  %s3 = inlined_call_operand.vmem [shape: bf16[512,128], index: 3, kind: input, shape index: {}]
  %s4 = inlined_call_operand.vmem [shape: f32[1,128], index: 4, kind: input, shape index: {}]
  %s5 = inlined_call_operand.vmem [shape: f32[2,256,128], index: 5, kind: output, shape index: {}]
  %s6 = sld [smem:[#allocation0]]
  $region53: #{rpn_forward_pallas.1} parent=0
    _
  %s8 = ssub.s32 1, %s6
  %s9 = scalar_select 0, %s8, %s6
  loop: start=0, step=1, limit=6
  $region2: #{rpn_forward_pallas.1} parent=0 // loop_pre_header
    _
  $region3: #{rpn_forward_pallas.1} parent=0 // loop_header
    %s11 = sphi 0, %s15
    %p12 = scmp.ge.s32.totalorder %s11, 6
    %s18 = sphi 0, %s30
    %s19 = sphi 0, %s26
    %s20 = sphi 0, %s18
    %s21 = sphi 0, %s19
    %s22 = sphi 0, %s20
    %s23 = sphi 0, %s21
    %s35 = sphi 0, %s37
    %s38 = sphi 0, %s35
    %s39 = sphi 0, %s38
    %s55 = sphi 0, %s39
    %s59 = sphi 0, %s59
    %s61 = sphi 0, %s59
    %s62 = sphi 0, %s61
    %s76 = sphi 0, %s62
    %s80 = sphi 0, %s80
    %s82 = sphi 0, %s80
    %s83 = sphi 0, %s82
    %s97 = sphi 0, %s83
    %s101 = sphi 0, %s101
    %s103 = sphi 0, %s101
    %s104 = sphi 0, %s103
    %s118 = sphi 0, %s104
    %s122 = sphi 0, %s122
    %s124 = sphi 0, %s122
    %s125 = sphi 0, %s124
    %s139 = sphi 0, %s125
    %s147 = sphi 0, %s149
    %s150 = sphi 0, %s147
    %s151 = sphi 0, %s150
    %s167 = sphi 0, %s151
  $region4: #{rpn_forward_pallas.1} parent=0 // loop_header_branch
    %14 = sbr.rel (%p12) target = $region8
  $region5: #{rpn_forward_pallas.1} parent=0 // loop_body
    %s16 = ssub.s32 %s11, 1
    %s17 = ssub.s32 %s11, 2
    %s24 = sadd.s32 1, %s19
    %p25 = scmp.ge.s32.totalorder %s24, 2
    %s26 = scalar_select %p25, 0, %s24
    %s27 = sadd.s32 1, %s18
    %s28 = scalar_select %p25, %s27, %s18
    %p29 = scmp.ge.s32.totalorder %s28, 2
    %s30 = scalar_select %p29, 0, %s28
    %s31 = ssub.s32 %s18, %s30
    %s32 = ssub.s32 %s19, %s26
    %s33 = sor.u32 %s31, %s32
    %p34 = scmp.eq.s32.totalorder %s33, 0
    %s36 = sadd.s32 %s35, 1
    %s37 = scalar_select %p34, %s35, %s36
    %p40 = pneg %p34
    %p41 = scmp.eq.s32.totalorder %s11, 3
    %p42 = por %p40, %p41
    %p43 = scmp.ne.s32.totalorder %s35, %s38
    %p44 = scmp.eq.s32.totalorder %s11, 0
    %p45 = por %p43, %p44
    %p46 = scmp.ne.s32.totalorder %s35, %s38
    %p47 = scmp.eq.s32.totalorder %s16, 3
    %p48 = por %p46, %p47
    %p49 = scmp.ne.s32.totalorder %s38, %s39
    %p50 = scmp.eq.s32.totalorder %s16, 0
    %p51 = por %p49, %p50
    %p52 = scmp.ne.s32.totalorder %s38, %s39
    %p53 = scmp.eq.s32.totalorder %s17, 3
    %p54 = por %p52, %p53
    %p56 = scmp.ne.s32.totalorder %s39, %s55
    %p57 = scmp.eq.s32.totalorder %s17, 0
    %p58 = por %p56, %p57
    %s60 = sadd.s32 %s59, 1
    %p63 = scmp.eq.s32.totalorder %s11, 3
    %p64 = scmp.ne.s32.totalorder %s59, %s61
    %p65 = scmp.eq.s32.totalorder %s11, 0
    %p66 = por %p64, %p65
    %p67 = scmp.ne.s32.totalorder %s59, %s61
    %p68 = scmp.eq.s32.totalorder %s16, 3
    %p69 = por %p67, %p68
    %p70 = scmp.ne.s32.totalorder %s61, %s62
    %p71 = scmp.eq.s32.totalorder %s16, 0
    %p72 = por %p70, %p71
    %p73 = scmp.ne.s32.totalorder %s61, %s62
    %p74 = scmp.eq.s32.totalorder %s17, 3
    %p75 = por %p73, %p74
    %p77 = scmp.ne.s32.totalorder %s62, %s76
    %p78 = scmp.eq.s32.totalorder %s17, 0
    %p79 = por %p77, %p78
    %s81 = sadd.s32 %s80, 1
    %p84 = scmp.eq.s32.totalorder %s11, 3
    %p85 = scmp.ne.s32.totalorder %s80, %s82
    %p86 = scmp.eq.s32.totalorder %s11, 0
    %p87 = por %p85, %p86
    %p88 = scmp.ne.s32.totalorder %s80, %s82
    %p89 = scmp.eq.s32.totalorder %s16, 3
    %p90 = por %p88, %p89
    %p91 = scmp.ne.s32.totalorder %s82, %s83
    %p92 = scmp.eq.s32.totalorder %s16, 0
    %p93 = por %p91, %p92
    %p94 = scmp.ne.s32.totalorder %s82, %s83
    %p95 = scmp.eq.s32.totalorder %s17, 3
    %p96 = por %p94, %p95
    %p98 = scmp.ne.s32.totalorder %s83, %s97
    %p99 = scmp.eq.s32.totalorder %s17, 0
    %p100 = por %p98, %p99
    %s102 = sadd.s32 %s101, 1
    %p105 = scmp.eq.s32.totalorder %s11, 3
    %p106 = scmp.ne.s32.totalorder %s101, %s103
    %p107 = scmp.eq.s32.totalorder %s11, 0
    %p108 = por %p106, %p107
    %p109 = scmp.ne.s32.totalorder %s101, %s103
    %p110 = scmp.eq.s32.totalorder %s16, 3
    %p111 = por %p109, %p110
    %p112 = scmp.ne.s32.totalorder %s103, %s104
    %p113 = scmp.eq.s32.totalorder %s16, 0
    %p114 = por %p112, %p113
    %p115 = scmp.ne.s32.totalorder %s103, %s104
    %p116 = scmp.eq.s32.totalorder %s17, 3
    %p117 = por %p115, %p116
    %p119 = scmp.ne.s32.totalorder %s104, %s118
    %p120 = scmp.eq.s32.totalorder %s17, 0
    %p121 = por %p119, %p120
    %s123 = sadd.s32 %s122, 1
    %p126 = scmp.eq.s32.totalorder %s11, 3
    %p127 = scmp.ne.s32.totalorder %s122, %s124
    %p128 = scmp.eq.s32.totalorder %s11, 0
    %p129 = por %p127, %p128
    %p130 = scmp.ne.s32.totalorder %s122, %s124
    %p131 = scmp.eq.s32.totalorder %s16, 3
    %p132 = por %p130, %p131
    %p133 = scmp.ne.s32.totalorder %s124, %s125
    %p134 = scmp.eq.s32.totalorder %s16, 0
    %p135 = por %p133, %p134
    %p136 = scmp.ne.s32.totalorder %s124, %s125
    %p137 = scmp.eq.s32.totalorder %s17, 3
    %p138 = por %p136, %p137
    %p140 = scmp.ne.s32.totalorder %s125, %s139
    %p141 = scmp.eq.s32.totalorder %s17, 0
    %p142 = por %p140, %p141
    %s143 = ssub.s32 %s18, %s30
    %s144 = ssub.s32 %s19, %s26
    %s145 = sor.u32 %s143, %s144
    %p146 = scmp.eq.s32.totalorder %s145, 0
    %s148 = sadd.s32 %s147, 1
    %s149 = scalar_select %p146, %s147, %s148
    %p152 = pneg %p146
    %p153 = scmp.eq.s32.totalorder %s11, 3
    %p154 = por %p152, %p153
    %p155 = scmp.ne.s32.totalorder %s147, %s150
    %p156 = scmp.eq.s32.totalorder %s11, 0
    %p157 = por %p155, %p156
    %p158 = scmp.ne.s32.totalorder %s147, %s150
    %p159 = scmp.eq.s32.totalorder %s16, 3
    %p160 = por %p158, %p159
    %p161 = scmp.ne.s32.totalorder %s150, %s151
    %p162 = scmp.eq.s32.totalorder %s16, 0
    %p163 = por %p161, %p162
    %p164 = scmp.ne.s32.totalorder %s150, %s151
    %p165 = scmp.eq.s32.totalorder %s17, 3
    %p166 = por %p164, %p165
    %p168 = scmp.ne.s32.totalorder %s151, %s167
    %p169 = scmp.eq.s32.totalorder %s17, 0
    %p170 = por %p168, %p169
    %p171 = scmp.le.s32.totalorder 1, %s11
    %p172 = scmp.lt.s32.totalorder %s11, 5
    %p173 = pnand %p171, %p172
    %p174 = pneg %p173
    // Predicated region
    $region9: #{rpn_forward_pallas.1} parent=5 // pred_check
      _
    $region10: #{rpn_forward_pallas.1} parent=5 // pred_check_branch
      %176 = sbr.rel (%p173) target = $region12
    $region11: #{rpn_forward_pallas.1} parent=5 // pred_region
      %s177 = ssub.s32 %s11, 1
      // Predicated region
      $region13: #{rpn_forward_pallas.1} parent=11 // pred_check
        %p178 = pneg %p72
      $region14: #{rpn_forward_pallas.1} parent=11 // pred_check_branch
        %180 = sbr.rel (%p178) target = $region16
      $region15: #{rpn_forward_pallas.1} parent=11 // pred_region
        _
      $region16: #{rpn_forward_pallas.1} parent=11 // pred_fallthru
        _
      // Predicated region
      $region17: #{rpn_forward_pallas.1} parent=11 // pred_check
        %p181 = pneg %p93
      $region18: #{rpn_forward_pallas.1} parent=11 // pred_check_branch
        %183 = sbr.rel (%p181) target = $region20
      $region19: #{rpn_forward_pallas.1} parent=11 // pred_region
        _
      $region20: #{rpn_forward_pallas.1} parent=11 // pred_fallthru
        _
      // Predicated region
      $region21: #{rpn_forward_pallas.1} parent=11 // pred_check
        %p184 = pneg %p114
      $region22: #{rpn_forward_pallas.1} parent=11 // pred_check_branch
        %186 = sbr.rel (%p184) target = $region24
      $region23: #{rpn_forward_pallas.1} parent=11 // pred_region
        _
      $region24: #{rpn_forward_pallas.1} parent=11 // pred_fallthru
        _
      // Predicated region
      $region25: #{rpn_forward_pallas.1} parent=11 // pred_check
        %p187 = pneg %p135
      $region26: #{rpn_forward_pallas.1} parent=11 // pred_check_branch
        %189 = sbr.rel (%p187) target = $region28
      $region27: #{rpn_forward_pallas.1} parent=11 // pred_region
        _
      $region28: #{rpn_forward_pallas.1} parent=11 // pred_fallthru
        _
    $region12: #{rpn_forward_pallas.1} parent=5 // pred_fallthru
      _
    %p190 = scmp.lt.s32.totalorder %s11, 4
    // Predicated region
    $region29: #{rpn_forward_pallas.1} parent=5 // pred_check
      %p191 = pneg %p190
    $region30: #{rpn_forward_pallas.1} parent=5 // pred_check_branch
      %193 = sbr.rel (%p191) target = $region32
    $region31: #{rpn_forward_pallas.1} parent=5 // pred_region
      // Predicated region
      $region33: #{rpn_forward_pallas.1} parent=31 // pred_check
        %p194 = pneg %p45
      $region34: #{rpn_forward_pallas.1} parent=31 // pred_check_branch
        %196 = sbr.rel (%p194) target = $region36
      $region35: #{rpn_forward_pallas.1} parent=31 // pred_region
        %s197 = smul.u32 8, %s19
        %p198 = scmp.lt.s32.totalorder %s18, 1
        %s199 = scalar_select %p198, %s18, 1
        %p200 = scmp.lt.s32.totalorder %s197, 15
        %s201 = scalar_select %p200, %s197, 15
        %s202 = smul.addr %s201, 2
        %s203 = smul.addr %s199, 32
        %s204 = sadd.s32 %s202, %s203
        %s205 = smul.addr %s204, 4
        %s206 = scalar_lea.vmem %s0, %s205
        %s207 = smul.u32 8, %s19
      $region36: #{rpn_forward_pallas.1} parent=31 // pred_fallthru
        _
    $region32: #{rpn_forward_pallas.1} parent=5 // pred_fallthru
      _
    %p208 = scmp.le.s32.totalorder 1, %s11
    %p209 = scmp.lt.s32.totalorder %s11, 5
    %p210 = pnand %p208, %p209
    %p211 = pneg %p210
    // Predicated region
    $region37: #{rpn_forward_pallas.1} parent=5 // pred_check
      _
    $region38: #{rpn_forward_pallas.1} parent=5 // pred_check_branch
      %213 = sbr.rel (%p210) target = $region40
    $region39: #{rpn_forward_pallas.1} parent=5 // pred_region
      %s214 = ssub.s32 %s11, 1
      %s215 = smul.u32 8, %s21
      %p216 = scmp.lt.s32.totalorder %s20, 1
      %s217 = scalar_select %p216, %s20, 1
      %p218 = scmp.lt.s32.totalorder %s215, 15
      %s219 = scalar_select %p218, %s215, 15
      %s220 = smul.addr %s219, 2
      %s221 = smul.addr %s217, 32
      %s222 = sadd.s32 %s220, %s221
      %s223 = smul.addr %s222, 4
      %s224 = scalar_lea.vmem %s0, %s223
      %p225 = pneg %p51
      %p226 = pneg %p48
      %p227 = pneg %p72
      %p228 = pneg %p69
      %p229 = pneg %p93
      %p230 = pneg %p90
      %p231 = pneg %p114
      %p232 = pneg %p111
      %p233 = pneg %p135
      %p234 = pneg %p132
      %p235 = pneg %p163
      %p236 = pneg %p160
      %s237 = smul.u32 16, %s21
      %p238 = scmp.lt.s32.totalorder %s20, 1
      %s239 = scalar_select %p238, %s20, 1
      %p240 = scmp.lt.s32.totalorder %s237, 31
      %s241 = scalar_select %p240, %s237, 31
      %s242 = smul.addr %s239, 32
      %s243 = sadd.s32 %s241, %s242
      %s244 = smul.addr %s243, 8
      %s245 = scalar_lea.vmem %s5, %s244
      %s246 = smul.u32 8, %s21
      %p247 = scmp.lt.s32.totalorder %s20, 1
      %s248 = scalar_select %p247, %s20, 1
      %p249 = scmp.lt.s32.totalorder %s246, 15
      %s250 = scalar_select %p249, %s246, 15
      %s251 = smul.addr %s250, 2
      %s252 = smul.addr %s248, 32
      %s253 = sadd.s32 %s251, %s252
      %s254 = smul.addr %s253, 4
      %s255 = scalar_lea.vmem %s0, %s254
      %s256 = smul.u32 8, %s21
      %s257 = smul.u32 16, %s21
      %p258 = scmp.lt.s32.totalorder %s20, 1
      %s259 = scalar_select %p258, %s20, 1
      %p260 = scmp.lt.s32.totalorder %s257, 31
      %s261 = scalar_select %p260, %s257, 31
      %s262 = smul.addr %s259, 32
      %s263 = sadd.s32 %s261, %s262
      %s264 = smul.addr %s263, 8
      %s265 = scalar_lea.vmem %s5, %s264
      %s266 = smul.u32 16, %s21
      %v268 = vld [vmem:[%s255] sm:$0xf]
      %v269 = vld [vmem:[%s255 + $0x4] sm:$0xf]
      %v270 = vld [vmem:[%s255 + $0x8] sm:$0xf]
      %v271 = vld [vmem:[%s255 + $0xc] sm:$0xf]
      %v272 = vld [vmem:[%s255 + $0x10] sm:$0xf]
      %v273 = vld [vmem:[%s255 + $0x14] sm:$0xf]
      %v274 = vld [vmem:[%s255 + $0x18] sm:$0xf]
      %v275 = vld [vmem:[%s255 + $0x1c] sm:$0xf]
      %v276 = vld [vmem:[%s255 + $0x20] sm:$0xf]
      %v277 = vld [vmem:[%s255 + $0x24] sm:$0xf]
      %v278 = vld [vmem:[%s255 + $0x28] sm:$0xf]
      %v279 = vld [vmem:[%s255 + $0x2c] sm:$0xf]
      %v280 = vld [vmem:[%s255 + $0x30] sm:$0xf]
      %v281 = vld [vmem:[%s255 + $0x34] sm:$0xf]
      %v282 = vld [vmem:[%s255 + $0x38] sm:$0xf]
      %v283 = vld [vmem:[%s255 + $0x3c] sm:$0xf]
      %v284 = vld [vmem:[%s1] sm:$0xff]
      %v285 = vld [vmem:[%s1 + $0x8] sm:$0xff]
      %v286 = vld [vmem:[%s1 + $0x10] sm:$0xff]
      %v287 = vld [vmem:[%s1 + $0x18] sm:$0xff]
      %v288 = vld [vmem:[%s1 + $0x20] sm:$0xff]
      %v289 = vld [vmem:[%s1 + $0x28] sm:$0xff]
      %v290 = vld [vmem:[%s1 + $0x30] sm:$0xff]
      %v291 = vld [vmem:[%s1 + $0x38] sm:$0xff]
      %v292 = vld [vmem:[%s1 + $0x40] sm:$0x33]
      %v293 = vld [vmem:[%s1 + $0x48] sm:$0x33]
      %v294 = vld [vmem:[%s2] sm:$0xf]
      %v296 = vlaneseq
      %v297 = vshrl.u32 %v296, 7
      %v298 = vsub.s32 0, %v297
      %v299 = vrot.slane %v294, %v298
      %v300 = vlaneseq
      %v301 = vshrl.u32 %v300, 7
      %v302 = vsub.s32 1, %v301
      %v303 = vrot.slane %v294, %v302
      %v304 = vlaneseq
      %v305 = vshrl.u32 %v304, 7
      %v306 = vsub.s32 2, %v305
      %v307 = vrot.slane %v294, %v306
      %v308 = vlaneseq
      %v309 = vshrl.u32 %v308, 7
      %v310 = vsub.s32 3, %v309
      %v311 = vrot.slane %v294, %v310
      %v332 = vunpack.c.l.b16 %v268
      %v333 = vunpack.c.l.b16 %v269
      %v334 = vunpack.c.l.b16 %v270
      %v335 = vunpack.c.l.b16 %v271
      %v336 = vunpack.c.l.b16 %v272
      %v337 = vunpack.c.l.b16 %v273
      %v338 = vunpack.c.l.b16 %v274
      %v339 = vunpack.c.l.b16 %v275
      %v340 = vunpack.c.l.b16 %v276
      %v341 = vunpack.c.l.b16 %v277
      %v342 = vunpack.c.l.b16 %v278
      %v343 = vunpack.c.l.b16 %v279
      %v344 = vunpack.c.l.b16 %v280
      %v345 = vunpack.c.l.b16 %v281
      %v346 = vunpack.c.l.b16 %v282
      %v347 = vunpack.c.l.b16 %v283
      %v348 = vpack.c.b16 %v333, %v332
      %v349 = vpack.c.b16 %v335, %v334
      %v350 = vpack.c.b16 %v337, %v336
      %v351 = vpack.c.b16 %v339, %v338
      %v352 = vpack.c.b16 %v341, %v340
      %v353 = vpack.c.b16 %v343, %v342
      %v354 = vpack.c.b16 %v345, %v344
      %v355 = vpack.c.b16 %v347, %v346
      %v366 = vunpack.c.l.b16 %v284
      %v367 = vunpack.c.h.b16 %v284
      %v368 = vunpack.c.l.b16 %v285
      %v369 = vunpack.c.h.b16 %v285
      %v370 = vunpack.c.l.b16 %v286
      %v371 = vunpack.c.h.b16 %v286
      %v372 = vunpack.c.l.b16 %v287
      %v373 = vunpack.c.h.b16 %v287
      %v374 = vunpack.c.l.b16 %v288
      %v375 = vunpack.c.h.b16 %v288
      %v376 = vunpack.c.l.b16 %v289
      %v377 = vunpack.c.h.b16 %v289
      %v378 = vunpack.c.l.b16 %v290
      %v379 = vunpack.c.h.b16 %v290
      %v380 = vunpack.c.l.b16 %v291
      %v381 = vunpack.c.h.b16 %v291
      %v382 = vunpack.c.l.b16 %v292
      %v383 = vunpack.c.h.b16 %v292
      %v384 = vunpack.c.l.b16 %v293
      %v385 = vunpack.c.h.b16 %v293
      %v386 = vpack.c.b16 %v370, %v366
      %v387 = vpack.c.b16 %v371, %v367
      %v388 = vpack.c.b16 %v372, %v368
      %v389 = vpack.c.b16 %v373, %v369
      %v390 = vpack.c.b16 %v378, %v374
      %v391 = vpack.c.b16 %v379, %v375
      %v392 = vpack.c.b16 %v380, %v376
      %v393 = vpack.c.b16 %v381, %v377
      %v394 = vpack.c.b16 %v382, %v382
      %v395 = vpack.c.b16 %v383, %v383
      %v396 = vpack.c.b16 %v384, %v384
      %v397 = vpack.c.b16 %v385, %v385
      %vm406 = vcmask 293888
      %v408 = vsel %vm406, %v348, 0
      %v411 = vsel %vm406, %v349, 0
      %v414 = vsel %vm406, %v350, 0
      %v417 = vsel %vm406, %v351, 0
      %v420 = vsel %vm406, %v352, 0
      %v423 = vsel %vm406, %v353, 0
      %v426 = vsel %vm406, %v354, 0
      %v429 = vsel %vm406, %v355, 0
      %vm431 = vcmask 1041408
      %v433 = vsel %vm431, %v394, 0
      %v436 = vsel %vm431, %v395, 0
      %v439 = vsel %vm431, %v396, 0
      %v442 = vsel %vm431, %v397, 0
      %444 = vmatprep.subr.bf16.mxu0 %v387
      %445 = vmatpush1.bf16.msra.mxu0 %v386
      %446 = vmatprep.subr.bf16.mxu0 %v391
      %447 = vmatpush1.bf16.msra.mxu0 %v390
      %448 = vmatprep.subr.bf16.mxu0 %v436
      %449 = vmatpush1.bf16.msra.mxu0 %v433
      %450 = vmatprep.subr.bf16.mxu0 0
      %451 = vmatpush1.bf16.msra.mxu0 0
      %452 = vmatprep.subr.bf16.mxu0 0
      %453 = vmatpush1.bf16.msra.mxu0 0
      %454 = vmatprep.subr.bf16.mxu0 0
      %455 = vmatpush1.bf16.msra.mxu0 0
      %456 = vmatprep.subr.bf16.mxu0 0
      %457 = vmatpush1.bf16.msra.mxu0 0
      %458 = vmatprep.subr.bf16.mxu0 0
      %459 = vmatpush1.bf16.msra.mxu0 0
      %460 = vmatprep.subr.bf16.mxu0 0
      %461 = vmatpush1.bf16.msra.mxu0 0
      %462 = vmatprep.subr.bf16.mxu0 0
      %463 = vmatpush1.bf16.msra.mxu0 0
      %464 = vmatprep.subr.bf16.mxu0 0
      %465 = vmatpush1.bf16.msra.mxu0 0
      %466 = vmatprep.subr.bf16.mxu0 0
      %467 = vmatpush1.bf16.msra.mxu0 0
      %468 = vmatprep.subr.bf16.mxu0 0
      %469 = vmatpush1.bf16.msra.mxu0 0
      %470 = vmatprep.subr.bf16.mxu0 0
      %471 = vmatpush1.bf16.msra.mxu0 0
      %472 = vmatprep.subr.bf16.mxu0 0
      %473 = vmatpush1.bf16.msra.mxu0 0
      %474 = vmatprep.subr.bf16.mxu0 0
      %475 = vmatpush1.bf16.msra.mxu0 0
      %476 = vmatprep.mubr.bf16.mxu0 0
      %477 = vmatmul.mubr.bf16.gmra.mrb[0].mxu0 %v408
      %v478 = vpop.f32.mrb[0].mxu0
      %v479 = vadd.f32 %v299, %v478
      %v480 = vpop.f32.mrb[0].mxu0
      %v481 = vadd.f32 %v303, %v480
      %v482 = vpop.f32.mrb[0].mxu0
      %v483 = vadd.f32 %v299, %v482
      %v484 = vpop.f32.mrb[0].mxu0
      %v485 = vadd.f32 %v303, %v484
      %486 = vmatprep.mubr.bf16.mxu0 0
      %487 = vmatmul.mubr.bf16.gmra.mrb[0].mxu0 %v411
      %v488 = vpop.f32.mrb[0].mxu0
      %v489 = vadd.f32 %v299, %v488
      %v490 = vpop.f32.mrb[0].mxu0
      %v491 = vadd.f32 %v303, %v490
      %v492 = vpop.f32.mrb[0].mxu0
      %v493 = vadd.f32 %v299, %v492
      %v494 = vpop.f32.mrb[0].mxu0
      %v495 = vadd.f32 %v303, %v494
      %496 = vmatprep.mubr.bf16.mxu0 0
      %497 = vmatmul.mubr.bf16.gmra.mrb[0].mxu0 %v414
      %v498 = vpop.f32.mrb[0].mxu0
      %v499 = vadd.f32 %v299, %v498
      %v500 = vpop.f32.mrb[0].mxu0
      %v501 = vadd.f32 %v303, %v500
      %v502 = vpop.f32.mrb[0].mxu0
      %v503 = vadd.f32 %v299, %v502
      %v504 = vpop.f32.mrb[0].mxu0
      %v505 = vadd.f32 %v303, %v504
      %506 = vmatprep.mubr.bf16.mxu0 0
      %507 = vmatmul.mubr.bf16.gmra.mrb[0].mxu0 %v417
      %v508 = vpop.f32.mrb[0].mxu0
      %v509 = vadd.f32 %v299, %v508
      %v510 = vpop.f32.mrb[0].mxu0
      %v511 = vadd.f32 %v303, %v510
      %v512 = vpop.f32.mrb[0].mxu0
      %v513 = vadd.f32 %v299, %v512
      %v514 = vpop.f32.mrb[0].mxu0
      %v515 = vadd.f32 %v303, %v514
      %516 = vmatprep.mubr.bf16.mxu0 0
      %517 = vmatmul.mubr.bf16.gmra.mrb[0].mxu0 %v420
      %v518 = vpop.f32.mrb[0].mxu0
      %v519 = vadd.f32 %v299, %v518
      %v520 = vpop.f32.mrb[0].mxu0
      %v521 = vadd.f32 %v303, %v520
      %v522 = vpop.f32.mrb[0].mxu0
      %v523 = vadd.f32 %v299, %v522
      %v524 = vpop.f32.mrb[0].mxu0
      %v525 = vadd.f32 %v303, %v524
      %526 = vmatprep.mubr.bf16.mxu0 0
      %527 = vmatmul.mubr.bf16.gmra.mrb[0].mxu0 %v423
      %v528 = vpop.f32.mrb[0].mxu0
      %v529 = vadd.f32 %v299, %v528
      %v530 = vpop.f32.mrb[0].mxu0
      %v531 = vadd.f32 %v303, %v530
      %v532 = vpop.f32.mrb[0].mxu0
      %v533 = vadd.f32 %v299, %v532
      %v534 = vpop.f32.mrb[0].mxu0
      %v535 = vadd.f32 %v303, %v534
      %536 = vmatprep.mubr.bf16.mxu0 0
      %537 = vmatmul.mubr.bf16.gmra.mrb[0].mxu0 %v426
      %v538 = vpop.f32.mrb[0].mxu0
      %v539 = vadd.f32 %v299, %v538
      %v540 = vpop.f32.mrb[0].mxu0
      %v541 = vadd.f32 %v303, %v540
      %v542 = vpop.f32.mrb[0].mxu0
      %v543 = vadd.f32 %v299, %v542
      %v544 = vpop.f32.mrb[0].mxu0
      %v545 = vadd.f32 %v303, %v544
      %546 = vmatprep.mubr.bf16.mxu0 0
      %547 = vmatmul.mubr.bf16.gmra.mrb[0].mxu0 %v429
      %v548 = vpop.f32.mrb[0].mxu0
      %v549 = vadd.f32 %v299, %v548
      %v550 = vpop.f32.mrb[0].mxu0
      %v551 = vadd.f32 %v303, %v550
      %v552 = vpop.f32.mrb[0].mxu0
      %v553 = vadd.f32 %v299, %v552
      %v554 = vpop.f32.mrb[0].mxu0
      %v555 = vadd.f32 %v303, %v554
      %556 = vdwg.mxu0
      %557 = vmatprep.subr.bf16.mxu0 %v389
      %558 = vmatpush1.bf16.msra.mxu0 %v388
      %559 = vmatprep.subr.bf16.mxu0 %v393
      %560 = vmatpush1.bf16.msra.mxu0 %v392
      %561 = vmatprep.subr.bf16.mxu0 %v442
      %562 = vmatpush1.bf16.msra.mxu0 %v439
      %563 = vmatprep.subr.bf16.mxu0 0
      %564 = vmatpush1.bf16.msra.mxu0 0
      %565 = vmatprep.subr.bf16.mxu0 0
      %566 = vmatpush1.bf16.msra.mxu0 0
      %567 = vmatprep.subr.bf16.mxu0 0
      %568 = vmatpush1.bf16.msra.mxu0 0
      %569 = vmatprep.subr.bf16.mxu0 0
      %570 = vmatpush1.bf16.msra.mxu0 0
      %571 = vmatprep.subr.bf16.mxu0 0
      %572 = vmatpush1.bf16.msra.mxu0 0
      %573 = vmatprep.subr.bf16.mxu0 0
      %574 = vmatpush1.bf16.msra.mxu0 0
      %575 = vmatprep.subr.bf16.mxu0 0
      %576 = vmatpush1.bf16.msra.mxu0 0
      %577 = vmatprep.subr.bf16.mxu0 0
      %578 = vmatpush1.bf16.msra.mxu0 0
      %579 = vmatprep.subr.bf16.mxu0 0
      %580 = vmatpush1.bf16.msra.mxu0 0
      %581 = vmatprep.subr.bf16.mxu0 0
      %582 = vmatpush1.bf16.msra.mxu0 0
      %583 = vmatprep.subr.bf16.mxu0 0
      %584 = vmatpush1.bf16.msra.mxu0 0
      %585 = vmatprep.subr.bf16.mxu0 0
      %586 = vmatpush1.bf16.msra.mxu0 0
      %587 = vmatprep.subr.bf16.mxu0 0
      %588 = vmatpush1.bf16.msra.mxu0 0
      %589 = vmatprep.mubr.bf16.mxu0 0
      %590 = vmatmul.mubr.bf16.gmra.mrb[0].mxu0 %v408
      %v591 = vpop.f32.mrb[0].mxu0
      %v592 = vadd.f32 %v307, %v591
      %v593 = vpop.f32.mrb[0].mxu0
      %v594 = vadd.f32 %v311, %v593
      %v595 = vpop.f32.mrb[0].mxu0
      %v596 = vadd.f32 %v307, %v595
      %v597 = vpop.f32.mrb[0].mxu0
      %v598 = vadd.f32 %v311, %v597
      %599 = vmatprep.mubr.bf16.mxu0 0
      %600 = vmatmul.mubr.bf16.gmra.mrb[0].mxu0 %v411
      %v601 = vpop.f32.mrb[0].mxu0
      %v602 = vadd.f32 %v307, %v601
      %v603 = vpop.f32.mrb[0].mxu0
      %v604 = vadd.f32 %v311, %v603
      %v605 = vpop.f32.mrb[0].mxu0
      %v606 = vadd.f32 %v307, %v605
      %v607 = vpop.f32.mrb[0].mxu0
      %v608 = vadd.f32 %v311, %v607
      %609 = vmatprep.mubr.bf16.mxu0 0
      %610 = vmatmul.mubr.bf16.gmra.mrb[0].mxu0 %v414
      %v611 = vpop.f32.mrb[0].mxu0
      %v612 = vadd.f32 %v307, %v611
      %v613 = vpop.f32.mrb[0].mxu0
      %v614 = vadd.f32 %v311, %v613
      %v615 = vpop.f32.mrb[0].mxu0
      %v616 = vadd.f32 %v307, %v615
      %v617 = vpop.f32.mrb[0].mxu0
      %v618 = vadd.f32 %v311, %v617
      %619 = vmatprep.mubr.bf16.mxu0 0
      %620 = vmatmul.mubr.bf16.gmra.mrb[0].mxu0 %v417
      %v621 = vpop.f32.mrb[0].mxu0
      %v622 = vadd.f32 %v307, %v621
      %v623 = vpop.f32.mrb[0].mxu0
      %v624 = vadd.f32 %v311, %v623
      %v625 = vpop.f32.mrb[0].mxu0
      %v626 = vadd.f32 %v307, %v625
      %v627 = vpop.f32.mrb[0].mxu0
      %v628 = vadd.f32 %v311, %v627
      %629 = vmatprep.mubr.bf16.mxu0 0
      %630 = vmatmul.mubr.bf16.gmra.mrb[0].mxu0 %v420
      %v631 = vpop.f32.mrb[0].mxu0
      %v632 = vadd.f32 %v307, %v631
      %v633 = vpop.f32.mrb[0].mxu0
      %v634 = vadd.f32 %v311, %v633
      %v635 = vpop.f32.mrb[0].mxu0
      %v636 = vadd.f32 %v307, %v635
      %v637 = vpop.f32.mrb[0].mxu0
      %v638 = vadd.f32 %v311, %v637
      %639 = vmatprep.mubr.bf16.mxu0 0
      %640 = vmatmul.mubr.bf16.gmra.mrb[0].mxu0 %v423
      %v641 = vpop.f32.mrb[0].mxu0
      %v642 = vadd.f32 %v307, %v641
      %v643 = vpop.f32.mrb[0].mxu0
      %v644 = vadd.f32 %v311, %v643
      %v645 = vpop.f32.mrb[0].mxu0
      %v646 = vadd.f32 %v307, %v645
      %v647 = vpop.f32.mrb[0].mxu0
      %v648 = vadd.f32 %v311, %v647
      %649 = vmatprep.mubr.bf16.mxu0 0
      %650 = vmatmul.mubr.bf16.gmra.mrb[0].mxu0 %v426
      %v651 = vpop.f32.mrb[0].mxu0
      %v652 = vadd.f32 %v307, %v651
      %v653 = vpop.f32.mrb[0].mxu0
      %v654 = vadd.f32 %v311, %v653
      %v655 = vpop.f32.mrb[0].mxu0
      %v656 = vadd.f32 %v307, %v655
      %v657 = vpop.f32.mrb[0].mxu0
      %v658 = vadd.f32 %v311, %v657
      %659 = vmatprep.mubr.bf16.mxu0 0
      %660 = vmatmul.mubr.bf16.gmra.mrb[0].mxu0 %v429
      %v661 = vpop.f32.mrb[0].mxu0
      %v662 = vadd.f32 %v307, %v661
      %v663 = vpop.f32.mrb[0].mxu0
      %v664 = vadd.f32 %v311, %v663
      %v665 = vpop.f32.mrb[0].mxu0
      %v666 = vadd.f32 %v307, %v665
      %v667 = vpop.f32.mrb[0].mxu0
      %v668 = vadd.f32 %v311, %v667
      %669 = vdwg.mxu0
      %v670 = vmax.f32 %v479, 0.0
      %v671 = vmax.f32 %v481, 0.0
      %v672 = vmax.f32 %v592, 0.0
      %v673 = vmax.f32 %v594, 0.0
      %v674 = vmax.f32 %v483, 0.0
      %v675 = vmax.f32 %v485, 0.0
      %v676 = vmax.f32 %v596, 0.0
      %v677 = vmax.f32 %v598, 0.0
      %v678 = vmax.f32 %v489, 0.0
      %v679 = vmax.f32 %v491, 0.0
      %v680 = vmax.f32 %v602, 0.0
      %v681 = vmax.f32 %v604, 0.0
      %v682 = vmax.f32 %v493, 0.0
      %v683 = vmax.f32 %v495, 0.0
      %v684 = vmax.f32 %v606, 0.0
      %v685 = vmax.f32 %v608, 0.0
      %v686 = vmax.f32 %v499, 0.0
      %v687 = vmax.f32 %v501, 0.0
      %v688 = vmax.f32 %v612, 0.0
      %v689 = vmax.f32 %v614, 0.0
      %v690 = vmax.f32 %v503, 0.0
      %v691 = vmax.f32 %v505, 0.0
      %v692 = vmax.f32 %v616, 0.0
      %v693 = vmax.f32 %v618, 0.0
      %v694 = vmax.f32 %v509, 0.0
      %v695 = vmax.f32 %v511, 0.0
      %v696 = vmax.f32 %v622, 0.0
      %v697 = vmax.f32 %v624, 0.0
      %v698 = vmax.f32 %v513, 0.0
      %v699 = vmax.f32 %v515, 0.0
      %v700 = vmax.f32 %v626, 0.0
      %v701 = vmax.f32 %v628, 0.0
      %v702 = vmax.f32 %v519, 0.0
      %v703 = vmax.f32 %v521, 0.0
      %v704 = vmax.f32 %v632, 0.0
      %v705 = vmax.f32 %v634, 0.0
      %v706 = vmax.f32 %v523, 0.0
      %v707 = vmax.f32 %v525, 0.0
      %v708 = vmax.f32 %v636, 0.0
      %v709 = vmax.f32 %v638, 0.0
      %v710 = vmax.f32 %v529, 0.0
      %v711 = vmax.f32 %v531, 0.0
      %v712 = vmax.f32 %v642, 0.0
      %v713 = vmax.f32 %v644, 0.0
      %v714 = vmax.f32 %v533, 0.0
      %v715 = vmax.f32 %v535, 0.0
      %v716 = vmax.f32 %v646, 0.0
      %v717 = vmax.f32 %v648, 0.0
      %v718 = vmax.f32 %v539, 0.0
      %v719 = vmax.f32 %v541, 0.0
      %v720 = vmax.f32 %v652, 0.0
      %v721 = vmax.f32 %v654, 0.0
      %v722 = vmax.f32 %v543, 0.0
      %v723 = vmax.f32 %v545, 0.0
      %v724 = vmax.f32 %v656, 0.0
      %v725 = vmax.f32 %v658, 0.0
      %v726 = vmax.f32 %v549, 0.0
      %v727 = vmax.f32 %v551, 0.0
      %v728 = vmax.f32 %v662, 0.0
      %v729 = vmax.f32 %v664, 0.0
      %v730 = vmax.f32 %v553, 0.0
      %v731 = vmax.f32 %v555, 0.0
      %v732 = vmax.f32 %v666, 0.0
      %v733 = vmax.f32 %v668, 0.0
      %v734 = vpack.c.bf16 %v674, %v670
      %v735 = vpack.c.bf16 %v675, %v671
      %v736 = vpack.c.bf16 %v676, %v672
      %v737 = vpack.c.bf16 %v677, %v673
      %v738 = vpack.c.bf16 %v682, %v678
      %v739 = vpack.c.bf16 %v683, %v679
      %v740 = vpack.c.bf16 %v684, %v680
      %v741 = vpack.c.bf16 %v685, %v681
      %v742 = vpack.c.bf16 %v690, %v686
      %v743 = vpack.c.bf16 %v691, %v687
      %v744 = vpack.c.bf16 %v692, %v688
      %v745 = vpack.c.bf16 %v693, %v689
      %v746 = vpack.c.bf16 %v698, %v694
      %v747 = vpack.c.bf16 %v699, %v695
      %v748 = vpack.c.bf16 %v700, %v696
      %v749 = vpack.c.bf16 %v701, %v697
      %v750 = vpack.c.bf16 %v706, %v702
      %v751 = vpack.c.bf16 %v707, %v703
      %v752 = vpack.c.bf16 %v708, %v704
      %v753 = vpack.c.bf16 %v709, %v705
      %v754 = vpack.c.bf16 %v714, %v710
      %v755 = vpack.c.bf16 %v715, %v711
      %v756 = vpack.c.bf16 %v716, %v712
      %v757 = vpack.c.bf16 %v717, %v713
      %v758 = vpack.c.bf16 %v722, %v718
      %v759 = vpack.c.bf16 %v723, %v719
      %v760 = vpack.c.bf16 %v724, %v720
      %v761 = vpack.c.bf16 %v725, %v721
      %v762 = vpack.c.bf16 %v730, %v726
      %v763 = vpack.c.bf16 %v731, %v727
      %v764 = vpack.c.bf16 %v732, %v728
      %v765 = vpack.c.bf16 %v733, %v729
      %v766 = vld [vmem:[%s3] sm:$0xf]
      %v767 = vld [vmem:[%s3 + $0x4] sm:$0xf]
      %v768 = vld [vmem:[%s3 + $0x8] sm:$0xf]
      %v769 = vld [vmem:[%s3 + $0xc] sm:$0xf]
      %v770 = vld [vmem:[%s3 + $0x10] sm:$0xf]
      %v771 = vld [vmem:[%s3 + $0x14] sm:$0xf]
      %v772 = vld [vmem:[%s3 + $0x18] sm:$0xf]
      %v773 = vld [vmem:[%s3 + $0x1c] sm:$0xf]
      %v774 = vld [vmem:[%s3 + $0x20] sm:$0xf]
      %v775 = vld [vmem:[%s3 + $0x24] sm:$0xf]
      %v776 = vld [vmem:[%s3 + $0x28] sm:$0xf]
      %v777 = vld [vmem:[%s3 + $0x2c] sm:$0xf]
      %v778 = vld [vmem:[%s3 + $0x30] sm:$0xf]
      %v779 = vld [vmem:[%s3 + $0x34] sm:$0xf]
      %v780 = vld [vmem:[%s3 + $0x38] sm:$0xf]
      %v781 = vld [vmem:[%s3 + $0x3c] sm:$0xf]
      %v782 = vld [vmem:[%s3 + $0x40] sm:$0xf]
      %v783 = vld [vmem:[%s3 + $0x44] sm:$0xf]
      %v784 = vld [vmem:[%s3 + $0x48] sm:$0xf]
      %v785 = vld [vmem:[%s3 + $0x4c] sm:$0xf]
      %v786 = vld [vmem:[%s3 + $0x50] sm:$0xf]
      %v787 = vld [vmem:[%s3 + $0x54] sm:$0xf]
      %v788 = vld [vmem:[%s3 + $0x58] sm:$0xf]
      %v789 = vld [vmem:[%s3 + $0x5c] sm:$0xf]
      %v790 = vld [vmem:[%s3 + $0x60] sm:$0xf]
      %v791 = vld [vmem:[%s3 + $0x64] sm:$0xf]
      %v792 = vld [vmem:[%s3 + $0x68] sm:$0xf]
      %v793 = vld [vmem:[%s3 + $0x6c] sm:$0xf]
      %v794 = vld [vmem:[%s3 + $0x70] sm:$0xf]
      %v795 = vld [vmem:[%s3 + $0x74] sm:$0xf]
      %v796 = vld [vmem:[%s3 + $0x78] sm:$0xf]
      %v797 = vld [vmem:[%s3 + $0x7c] sm:$0xf]
      %v798 = vld [vmem:[%s3 + $0x80] sm:$0xf]
      %v799 = vld [vmem:[%s3 + $0x84] sm:$0xf]
      %v800 = vld [vmem:[%s3 + $0x88] sm:$0xf]
      %v801 = vld [vmem:[%s3 + $0x8c] sm:$0xf]
      %v802 = vld [vmem:[%s3 + $0x90] sm:$0xf]
      %v803 = vld [vmem:[%s3 + $0x94] sm:$0xf]
      %v804 = vld [vmem:[%s3 + $0x98] sm:$0xf]
      %v805 = vld [vmem:[%s3 + $0x9c] sm:$0xf]
      %v806 = vld [vmem:[%s3 + $0xa0] sm:$0xf]
      %v807 = vld [vmem:[%s3 + $0xa4] sm:$0xf]
      %v808 = vld [vmem:[%s3 + $0xa8] sm:$0xf]
      %v809 = vld [vmem:[%s3 + $0xac] sm:$0xf]
      %v810 = vld [vmem:[%s3 + $0xb0] sm:$0xf]
      %v811 = vld [vmem:[%s3 + $0xb4] sm:$0xf]
      %v812 = vld [vmem:[%s3 + $0xb8] sm:$0xf]
      %v813 = vld [vmem:[%s3 + $0xbc] sm:$0xf]
      %v814 = vld [vmem:[%s3 + $0xc0] sm:$0xf]
      %v815 = vld [vmem:[%s3 + $0xc4] sm:$0xf]
      %v816 = vld [vmem:[%s3 + $0xc8] sm:$0xf]
      %v817 = vld [vmem:[%s3 + $0xcc] sm:$0xf]
      %v818 = vld [vmem:[%s3 + $0xd0] sm:$0xf]
      %v819 = vld [vmem:[%s3 + $0xd4] sm:$0xf]
      %v820 = vld [vmem:[%s3 + $0xd8] sm:$0xf]
      %v821 = vld [vmem:[%s3 + $0xdc] sm:$0xf]
      %v822 = vld [vmem:[%s3 + $0xe0] sm:$0xf]
      %v823 = vld [vmem:[%s3 + $0xe4] sm:$0xf]
      %v824 = vld [vmem:[%s3 + $0xe8] sm:$0xf]
      %v825 = vld [vmem:[%s3 + $0xec] sm:$0xf]
      %v826 = vld [vmem:[%s3 + $0xf0] sm:$0xf]
      %v827 = vld [vmem:[%s3 + $0xf4] sm:$0xf]
      %v828 = vld [vmem:[%s3 + $0xf8] sm:$0xf]
      %v829 = vld [vmem:[%s3 + $0xfc] sm:$0xf]
      %v830 = vld [vmem:[%s4] sm:$0x1]
      %v832 = vlaneseq
      %v833 = vshrl.u32 %v832, 7
      %v834 = vsub.s32 0, %v833
      %v835 = vrot.slane %v830, %v834
      %v901 = vunpack.c.l.b16 %v766
      %v902 = vunpack.c.l.b16 %v767
      %v903 = vunpack.c.l.b16 %v768
      %v904 = vunpack.c.l.b16 %v769
      %v905 = vunpack.c.l.b16 %v770
      %v906 = vunpack.c.l.b16 %v771
      %v907 = vunpack.c.l.b16 %v772
      %v908 = vunpack.c.l.b16 %v773
      %v909 = vunpack.c.l.b16 %v774
      %v910 = vunpack.c.l.b16 %v775
      %v911 = vunpack.c.l.b16 %v776
      %v912 = vunpack.c.l.b16 %v777
      %v913 = vunpack.c.l.b16 %v778
      %v914 = vunpack.c.l.b16 %v779
      %v915 = vunpack.c.l.b16 %v780
      %v916 = vunpack.c.l.b16 %v781
      %v917 = vunpack.c.l.b16 %v782
      %v918 = vunpack.c.l.b16 %v783
      %v919 = vunpack.c.l.b16 %v784
      %v920 = vunpack.c.l.b16 %v785
      %v921 = vunpack.c.l.b16 %v786
      %v922 = vunpack.c.l.b16 %v787
      %v923 = vunpack.c.l.b16 %v788
      %v924 = vunpack.c.l.b16 %v789
      %v925 = vunpack.c.l.b16 %v790
      %v926 = vunpack.c.l.b16 %v791
      %v927 = vunpack.c.l.b16 %v792
      %v928 = vunpack.c.l.b16 %v793
      %v929 = vunpack.c.l.b16 %v794
      %v930 = vunpack.c.l.b16 %v795
      %v931 = vunpack.c.l.b16 %v796
      %v932 = vunpack.c.l.b16 %v797
      %v933 = vunpack.c.l.b16 %v798
      %v934 = vunpack.c.l.b16 %v799
      %v935 = vunpack.c.l.b16 %v800
      %v936 = vunpack.c.l.b16 %v801
      %v937 = vunpack.c.l.b16 %v802
      %v938 = vunpack.c.l.b16 %v803
      %v939 = vunpack.c.l.b16 %v804
      %v940 = vunpack.c.l.b16 %v805
      %v941 = vunpack.c.l.b16 %v806
      %v942 = vunpack.c.l.b16 %v807
      %v943 = vunpack.c.l.b16 %v808
      %v944 = vunpack.c.l.b16 %v809
      %v945 = vunpack.c.l.b16 %v810
      %v946 = vunpack.c.l.b16 %v811
      %v947 = vunpack.c.l.b16 %v812
      %v948 = vunpack.c.l.b16 %v813
      %v949 = vunpack.c.l.b16 %v814
      %v950 = vunpack.c.l.b16 %v815
      %v951 = vunpack.c.l.b16 %v816
      %v952 = vunpack.c.l.b16 %v817
      %v953 = vunpack.c.l.b16 %v818
      %v954 = vunpack.c.l.b16 %v819
      %v955 = vunpack.c.l.b16 %v820
      %v956 = vunpack.c.l.b16 %v821
      %v957 = vunpack.c.l.b16 %v822
      %v958 = vunpack.c.l.b16 %v823
      %v959 = vunpack.c.l.b16 %v824
      %v960 = vunpack.c.l.b16 %v825
      %v961 = vunpack.c.l.b16 %v826
      %v962 = vunpack.c.l.b16 %v827
      %v963 = vunpack.c.l.b16 %v828
      %v964 = vunpack.c.l.b16 %v829
      %v965 = vpack.c.b16 %v902, %v901
      %v966 = vpack.c.b16 %v904, %v903
      %v967 = vpack.c.b16 %v906, %v905
      %v968 = vpack.c.b16 %v908, %v907
      %v969 = vpack.c.b16 %v910, %v909
      %v970 = vpack.c.b16 %v912, %v911
      %v971 = vpack.c.b16 %v914, %v913
      %v972 = vpack.c.b16 %v916, %v915
      %v973 = vpack.c.b16 %v918, %v917
      %v974 = vpack.c.b16 %v920, %v919
      %v975 = vpack.c.b16 %v922, %v921
      %v976 = vpack.c.b16 %v924, %v923
      %v977 = vpack.c.b16 %v926, %v925
      %v978 = vpack.c.b16 %v928, %v927
      %v979 = vpack.c.b16 %v930, %v929
      %v980 = vpack.c.b16 %v932, %v931
      %v981 = vpack.c.b16 %v934, %v933
      %v982 = vpack.c.b16 %v936, %v935
      %v983 = vpack.c.b16 %v938, %v937
      %v984 = vpack.c.b16 %v940, %v939
      %v985 = vpack.c.b16 %v942, %v941
      %v986 = vpack.c.b16 %v944, %v943
      %v987 = vpack.c.b16 %v946, %v945
      %v988 = vpack.c.b16 %v948, %v947
      %v989 = vpack.c.b16 %v950, %v949
      %v990 = vpack.c.b16 %v952, %v951
      %v991 = vpack.c.b16 %v954, %v953
      %v992 = vpack.c.b16 %v956, %v955
      %v993 = vpack.c.b16 %v958, %v957
      %v994 = vpack.c.b16 %v960, %v959
      %v995 = vpack.c.b16 %v962, %v961
      %v996 = vpack.c.b16 %v964, %v963
      %1029 = vmatprep.subr.bf16.mxu0 0
      %1030 = vmatpush1.bf16.msra.mxu0 %v965
      %1031 = vmatprep.subr.bf16.mxu0 0
      %1032 = vmatpush1.bf16.msra.mxu0 %v966
      %1033 = vmatprep.subr.bf16.mxu0 0
      %1034 = vmatpush1.bf16.msra.mxu0 %v967
      %1035 = vmatprep.subr.bf16.mxu0 0
      %1036 = vmatpush1.bf16.msra.mxu0 %v968
      %1037 = vmatprep.subr.bf16.mxu0 0
      %1038 = vmatpush1.bf16.msra.mxu0 %v969
      %1039 = vmatprep.subr.bf16.mxu0 0
      %1040 = vmatpush1.bf16.msra.mxu0 %v970
      %1041 = vmatprep.subr.bf16.mxu0 0
      %1042 = vmatpush1.bf16.msra.mxu0 %v971
      %1043 = vmatprep.subr.bf16.mxu0 0
      %1044 = vmatpush1.bf16.msra.mxu0 %v972
      %1045 = vmatprep.subr.bf16.mxu0 0
      %1046 = vmatpush1.bf16.msra.mxu0 %v973
      %1047 = vmatprep.subr.bf16.mxu0 0
      %1048 = vmatpush1.bf16.msra.mxu0 %v974
      %1049 = vmatprep.subr.bf16.mxu0 0
      %1050 = vmatpush1.bf16.msra.mxu0 %v975
      %1051 = vmatprep.subr.bf16.mxu0 0
      %1052 = vmatpush1.bf16.msra.mxu0 %v976
      %1053 = vmatprep.subr.bf16.mxu0 0
      %1054 = vmatpush1.bf16.msra.mxu0 %v977
      %1055 = vmatprep.subr.bf16.mxu0 0
      %1056 = vmatpush1.bf16.msra.mxu0 %v978
      %1057 = vmatprep.subr.bf16.mxu0 0
      %1058 = vmatpush1.bf16.msra.mxu0 %v979
      %1059 = vmatprep.subr.bf16.mxu0 0
      %1060 = vmatpush1.bf16.msra.mxu0 %v980
      %1061 = vmatprep.mubr.bf16.mxu0 %v735
      %1062 = vmatmul.mubr.bf16.gmra.mrb[0].mxu0 %v734
      %v1063 = vpop.f32.mrb[0].mxu0
      %v1064 = vadd.f32 %v835, %v1063
      %v1065 = vpop.f32.mrb[0].mxu0
      %v1066 = vpop.f32.mrb[0].mxu0
      %v1067 = vadd.f32 %v835, %v1066
      %v1068 = vpop.f32.mrb[0].mxu0
      %1069 = vmatprep.mubr.bf16.mxu0 %v739
      %1070 = vmatmul.mubr.bf16.gmra.mrb[0].mxu0 %v738
      %v1071 = vpop.f32.mrb[0].mxu0
      %v1072 = vadd.f32 %v835, %v1071
      %v1073 = vpop.f32.mrb[0].mxu0
      %v1074 = vpop.f32.mrb[0].mxu0
      %v1075 = vadd.f32 %v835, %v1074
      %v1076 = vpop.f32.mrb[0].mxu0
      %1077 = vmatprep.mubr.bf16.mxu0 %v743
      %1078 = vmatmul.mubr.bf16.gmra.mrb[0].mxu0 %v742
      %v1079 = vpop.f32.mrb[0].mxu0
      %v1080 = vadd.f32 %v835, %v1079
      %v1081 = vpop.f32.mrb[0].mxu0
      %v1082 = vpop.f32.mrb[0].mxu0
      %v1083 = vadd.f32 %v835, %v1082
      %v1084 = vpop.f32.mrb[0].mxu0
      %1085 = vmatprep.mubr.bf16.mxu0 %v747
      %1086 = vmatmul.mubr.bf16.gmra.mrb[0].mxu0 %v746
      %v1087 = vpop.f32.mrb[0].mxu0
      %v1088 = vadd.f32 %v835, %v1087
      %v1089 = vpop.f32.mrb[0].mxu0
      %v1090 = vpop.f32.mrb[0].mxu0
      %v1091 = vadd.f32 %v835, %v1090
      %v1092 = vpop.f32.mrb[0].mxu0
      %1093 = vmatprep.mubr.bf16.mxu0 %v751
      %1094 = vmatmul.mubr.bf16.gmra.mrb[0].mxu0 %v750
      %v1095 = vpop.f32.mrb[0].mxu0
      %v1096 = vadd.f32 %v835, %v1095
      %v1097 = vpop.f32.mrb[0].mxu0
      %v1098 = vpop.f32.mrb[0].mxu0
      %v1099 = vadd.f32 %v835, %v1098
      %v1100 = vpop.f32.mrb[0].mxu0
      %1101 = vmatprep.mubr.bf16.mxu0 %v755
      %1102 = vmatmul.mubr.bf16.gmra.mrb[0].mxu0 %v754
      %v1103 = vpop.f32.mrb[0].mxu0
      %v1104 = vadd.f32 %v835, %v1103
      %v1105 = vpop.f32.mrb[0].mxu0
      %v1106 = vpop.f32.mrb[0].mxu0
      %v1107 = vadd.f32 %v835, %v1106
      %v1108 = vpop.f32.mrb[0].mxu0
      %1109 = vmatprep.mubr.bf16.mxu0 %v759
      %1110 = vmatmul.mubr.bf16.gmra.mrb[0].mxu0 %v758
      %v1111 = vpop.f32.mrb[0].mxu0
      %v1112 = vadd.f32 %v835, %v1111
      %v1113 = vpop.f32.mrb[0].mxu0
      %v1114 = vpop.f32.mrb[0].mxu0
      %v1115 = vadd.f32 %v835, %v1114
      %v1116 = vpop.f32.mrb[0].mxu0
      %1117 = vmatprep.mubr.bf16.mxu0 %v763
      %1118 = vmatmul.mubr.bf16.gmra.mrb[0].mxu0 %v762
      %v1119 = vpop.f32.mrb[0].mxu0
      %v1120 = vadd.f32 %v835, %v1119
      %v1121 = vpop.f32.mrb[0].mxu0
      %v1122 = vpop.f32.mrb[0].mxu0
      %v1123 = vadd.f32 %v835, %v1122
      %v1124 = vpop.f32.mrb[0].mxu0
      %1125 = vdwg.mxu0
      %1126 = vmatprep.subr.bf16.mxu0 0
      %1127 = vmatpush1.bf16.msra.mxu0 %v981
      %1128 = vmatprep.subr.bf16.mxu0 0
      %1129 = vmatpush1.bf16.msra.mxu0 %v982
      %1130 = vmatprep.subr.bf16.mxu0 0
      %1131 = vmatpush1.bf16.msra.mxu0 %v983
      %1132 = vmatprep.subr.bf16.mxu0 0
      %1133 = vmatpush1.bf16.msra.mxu0 %v984
      %1134 = vmatprep.subr.bf16.mxu0 0
      %1135 = vmatpush1.bf16.msra.mxu0 %v985
      %1136 = vmatprep.subr.bf16.mxu0 0
      %1137 = vmatpush1.bf16.msra.mxu0 %v986
      %1138 = vmatprep.subr.bf16.mxu0 0
      %1139 = vmatpush1.bf16.msra.mxu0 %v987
      %1140 = vmatprep.subr.bf16.mxu0 0
      %1141 = vmatpush1.bf16.msra.mxu0 %v988
      %1142 = vmatprep.subr.bf16.mxu0 0
      %1143 = vmatpush1.bf16.msra.mxu0 %v989
      %1144 = vmatprep.subr.bf16.mxu0 0
      %1145 = vmatpush1.bf16.msra.mxu0 %v990
      %1146 = vmatprep.subr.bf16.mxu0 0
      %1147 = vmatpush1.bf16.msra.mxu0 %v991
      %1148 = vmatprep.subr.bf16.mxu0 0
      %1149 = vmatpush1.bf16.msra.mxu0 %v992
      %1150 = vmatprep.subr.bf16.mxu0 0
      %1151 = vmatpush1.bf16.msra.mxu0 %v993
      %1152 = vmatprep.subr.bf16.mxu0 0
      %1153 = vmatpush1.bf16.msra.mxu0 %v994
      %1154 = vmatprep.subr.bf16.mxu0 0
      %1155 = vmatpush1.bf16.msra.mxu0 %v995
      %1156 = vmatprep.subr.bf16.mxu0 0
      %1157 = vmatpush1.bf16.msra.mxu0 %v996
      %1158 = vmatprep.mubr.bf16.mxu0 %v737
      %1159 = vmatmul.mubr.bf16.gmra.mrb[0].mxu0 %v736
      %v1160 = vpop.f32.mrb[0].mxu0
      %v1161 = vadd.f32 %v1064, %v1160
      %v1162 = vpop.f32.mrb[0].mxu0
      %v1163 = vpop.f32.mrb[0].mxu0
      %v1164 = vadd.f32 %v1067, %v1163
      %v1165 = vpop.f32.mrb[0].mxu0
      %1166 = vmatprep.mubr.bf16.mxu0 %v741
      %1167 = vmatmul.mubr.bf16.gmra.mrb[0].mxu0 %v740
      %v1168 = vpop.f32.mrb[0].mxu0
      %v1169 = vadd.f32 %v1072, %v1168
      %v1170 = vpop.f32.mrb[0].mxu0
      %v1171 = vpop.f32.mrb[0].mxu0
      %v1172 = vadd.f32 %v1075, %v1171
      %v1173 = vpop.f32.mrb[0].mxu0
      %1174 = vmatprep.mubr.bf16.mxu0 %v745
      %1175 = vmatmul.mubr.bf16.gmra.mrb[0].mxu0 %v744
      %v1176 = vpop.f32.mrb[0].mxu0
      %v1177 = vadd.f32 %v1080, %v1176
      %v1178 = vpop.f32.mrb[0].mxu0
      %v1179 = vpop.f32.mrb[0].mxu0
      %v1180 = vadd.f32 %v1083, %v1179
      %v1181 = vpop.f32.mrb[0].mxu0
      %1182 = vmatprep.mubr.bf16.mxu0 %v749
      %1183 = vmatmul.mubr.bf16.gmra.mrb[0].mxu0 %v748
      %v1184 = vpop.f32.mrb[0].mxu0
      %v1185 = vadd.f32 %v1088, %v1184
      %v1186 = vpop.f32.mrb[0].mxu0
      %v1187 = vpop.f32.mrb[0].mxu0
      %v1188 = vadd.f32 %v1091, %v1187
      %v1189 = vpop.f32.mrb[0].mxu0
      %1190 = vmatprep.mubr.bf16.mxu0 %v753
      %1191 = vmatmul.mubr.bf16.gmra.mrb[0].mxu0 %v752
      %v1192 = vpop.f32.mrb[0].mxu0
      %v1193 = vadd.f32 %v1096, %v1192
      %v1194 = vpop.f32.mrb[0].mxu0
      %v1195 = vpop.f32.mrb[0].mxu0
      %v1196 = vadd.f32 %v1099, %v1195
      %v1197 = vpop.f32.mrb[0].mxu0
      %1198 = vmatprep.mubr.bf16.mxu0 %v757
      %1199 = vmatmul.mubr.bf16.gmra.mrb[0].mxu0 %v756
      %v1200 = vpop.f32.mrb[0].mxu0
      %v1201 = vadd.f32 %v1104, %v1200
      %v1202 = vpop.f32.mrb[0].mxu0
      %v1203 = vpop.f32.mrb[0].mxu0
      %v1204 = vadd.f32 %v1107, %v1203
      %v1205 = vpop.f32.mrb[0].mxu0
      %1206 = vmatprep.mubr.bf16.mxu0 %v761
      %1207 = vmatmul.mubr.bf16.gmra.mrb[0].mxu0 %v760
      %v1208 = vpop.f32.mrb[0].mxu0
      %v1209 = vadd.f32 %v1112, %v1208
      %v1210 = vpop.f32.mrb[0].mxu0
      %v1211 = vpop.f32.mrb[0].mxu0
      %v1212 = vadd.f32 %v1115, %v1211
      %v1213 = vpop.f32.mrb[0].mxu0
      %1214 = vmatprep.mubr.bf16.mxu0 %v765
      %1215 = vmatmul.mubr.bf16.gmra.mrb[0].mxu0 %v764
      %v1216 = vpop.f32.mrb[0].mxu0
      %v1217 = vadd.f32 %v1120, %v1216
      %v1218 = vpop.f32.mrb[0].mxu0
      %v1219 = vpop.f32.mrb[0].mxu0
      %v1220 = vadd.f32 %v1123, %v1219
      %v1221 = vpop.f32.mrb[0].mxu0
      %1222 = vdwg.mxu0
      %1223 = vst [vmem:[%s265] sm:$0xff] %v1161
      %1224 = vst [vmem:[%s265 + $0x8] sm:$0xff] %v1164
      %1225 = vst [vmem:[%s265 + $0x10] sm:$0xff] %v1169
      %1226 = vst [vmem:[%s265 + $0x18] sm:$0xff] %v1172
      %1227 = vst [vmem:[%s265 + $0x20] sm:$0xff] %v1177
      %1228 = vst [vmem:[%s265 + $0x28] sm:$0xff] %v1180
      %1229 = vst [vmem:[%s265 + $0x30] sm:$0xff] %v1185
      %1230 = vst [vmem:[%s265 + $0x38] sm:$0xff] %v1188
      %1231 = vst [vmem:[%s265 + $0x40] sm:$0xff] %v1193
      %1232 = vst [vmem:[%s265 + $0x48] sm:$0xff] %v1196
      %1233 = vst [vmem:[%s265 + $0x50] sm:$0xff] %v1201
      %1234 = vst [vmem:[%s265 + $0x58] sm:$0xff] %v1204
      %1235 = vst [vmem:[%s265 + $0x60] sm:$0xff] %v1209
      %1236 = vst [vmem:[%s265 + $0x68] sm:$0xff] %v1212
      %1237 = vst [vmem:[%s265 + $0x70] sm:$0xff] %v1217
      %1238 = vst [vmem:[%s265 + $0x78] sm:$0xff] %v1220
      %s1239 = smul.u32 16, %s21
      %p1240 = scmp.lt.s32.totalorder %s20, 1
      %s1241 = scalar_select %p1240, %s20, 1
      %p1242 = scmp.lt.s32.totalorder %s1239, 31
      %s1243 = scalar_select %p1242, %s1239, 31
      %s1244 = smul.addr %s1241, 32
      %s1245 = sadd.s32 %s1243, %s1244
      %s1246 = smul.addr %s1245, 8
      %s1247 = scalar_lea.vmem %s5, %s1246
      // Predicated region
      $region41: #{rpn_forward_pallas.1} parent=39 // pred_check
        %p1248 = pneg %p160
      $region42: #{rpn_forward_pallas.1} parent=39 // pred_check_branch
        %1250 = sbr.rel (%p1248) target = $region44
      $region43: #{rpn_forward_pallas.1} parent=39 // pred_region
        %s1251 = smul.u32 16, %s21
      $region44: #{rpn_forward_pallas.1} parent=39 // pred_fallthru
        _
    $region40: #{rpn_forward_pallas.1} parent=5 // pred_fallthru
      _
    %p1252 = scmp.le.s32.totalorder 2, %s11
    // Predicated region
    $region45: #{rpn_forward_pallas.1} parent=5 // pred_check
      %p1253 = pneg %p1252
    $region46: #{rpn_forward_pallas.1} parent=5 // pred_check_branch
      %1255 = sbr.rel (%p1253) target = $region48
    $region47: #{rpn_forward_pallas.1} parent=5 // pred_region
      %s1256 = ssub.s32 %s11, 2
      // Predicated region
      $region49: #{rpn_forward_pallas.1} parent=47 // pred_check
        %p1257 = pneg %p166
      $region50: #{rpn_forward_pallas.1} parent=47 // pred_check_branch
        %1259 = sbr.rel (%p1257) target = $region52
      $region51: #{rpn_forward_pallas.1} parent=47 // pred_region
        %s1260 = smul.u32 16, %s23
        %p1261 = scmp.lt.s32.totalorder %s22, 1
        %s1262 = scalar_select %p1261, %s22, 1
        %p1263 = scmp.lt.s32.totalorder %s1260, 31
        %s1264 = scalar_select %p1263, %s1260, 31
        %s1265 = smul.addr %s1262, 32
        %s1266 = sadd.s32 %s1264, %s1265
        %s1267 = smul.addr %s1266, 8
        %s1268 = scalar_lea.vmem %s5, %s1267
      $region52: #{rpn_forward_pallas.1} parent=47 // pred_fallthru
        _
    $region48: #{rpn_forward_pallas.1} parent=5 // pred_fallthru
      _
  $region6: #{rpn_forward_pallas.1} parent=0 // loop_footer
    %s15 = sadd.s32 1, %s11
  $region7: #{rpn_forward_pallas.1} parent=0 // loop_footer_branch
    %10 = sbr.rel target = $region3
  $region8: #{rpn_forward_pallas.1} parent=0 // loop_exit
    _

</llo_original>
